<compile_context>
chip_gen: v5e
topology: v5e:2x2
jax: 0.10.0
libtpu: 0.0.40
codegen_flags: <defaults>
</compile_context>

<pallas_src>
import jax
import jax.numpy as jnp
from jax.experimental import pallas as pl
from jax.experimental.pallas import tpu as pltpu

SCALE = 500.0  # default `scale` of compute_wecc


def _wect_points_kernel(lin_ref, nh_ref, onehot_ref, out_ref):
    # lin_ref    : VMEM [1, S_blk*T]  f32   SCALE*lin[s], each bump step repeated T times
    # nh_ref     : VMEM [N, S_blk*T]  f32   SCALE*(x @ v), tiled S_blk times along lanes
    # onehot_ref : VMEM [B, N]        bf16  one_hot(batch_idx) * node_weights
    # out_ref    : VMEM [B, S_blk*T]  f32   lane-dense slab of the [B, S*T] output
    ecc = jax.nn.sigmoid(lin_ref[...] - nh_ref[...])                    # [N, S_blk*T] (EUP)
    out_ref[...] = jnp.dot(onehot_ref[...], ecc.astype(jnp.bfloat16),
                           preferred_element_type=jnp.float32)          # [B, S_blk*T] (MXU)


def _choose_s_block(S, T):
    """Smallest divisor of S making the output slab lane-dense (S_blk*T a
    multiple of 128); falls back to the whole S axis."""
    for cand in range(1, S + 1):
        if S % cand == 0 and (cand * T) % 128 == 0:
            return cand
    return S


def wect_points_pallas(x, batch_idx, node_weights, v, lin, num_graphs):
    """Pallas forward of WECTLayer with ect_type='points'.  Returns [B, S, T]."""
    N, _ = x.shape
    _, T = v.shape
    S = lin.shape[0]
    B = int(num_graphs)
    s_blk = _choose_s_block(S, T)

    # --- S-invariant prep, done once outside the bump-step loop (hoisted). ---
    nh_scaled = SCALE * (x.astype(jnp.float32) @ v.astype(jnp.float32))    # [N, T]
    nh_tiled = jnp.tile(nh_scaled, (1, s_blk))                             # [N, s_blk*T]
    lin_rep = jnp.repeat(SCALE * lin.astype(jnp.float32), T).reshape(1, S * T)
    onehot_w = ((batch_idx[None, :] == jnp.arange(B, dtype=batch_idx.dtype)[:, None])
                .astype(jnp.float32)
                * node_weights.astype(jnp.float32)[None, :]
                ).astype(jnp.bfloat16)                                     # [B, N]

    out_flat = pl.pallas_call(
        _wect_points_kernel,
        out_shape=jax.ShapeDtypeStruct((B, S * T), jnp.float32),
        grid=(S // s_blk,),
        in_specs=[
            pl.BlockSpec((1, s_blk * T), lambda s: (0, s)),   # lin slab for this step block
            pl.BlockSpec((N, s_blk * T), lambda s: (0, 0)),   # nh (resident, DMA'd once)
            pl.BlockSpec((B, N), lambda s: (0, 0)),           # weighted one-hot (resident)
        ],
        out_specs=pl.BlockSpec((B, s_blk * T), lambda s: (0, s)),
        compiler_params=pltpu.CompilerParams(
            dimension_semantics=("parallel",)),               # megacore-friendly on v7x
    )(lin_rep, nh_tiled, onehot_w)

    # Row-major split of the last axis: layout-free, already in [B, S, T] order.
    return out_flat.reshape(B, S, T)


class WECTLayer:
    """JAX/Pallas port of dect.wect.WECTLayer (ect_type='points', fixed v)."""

    def __init__(self, v, radius=1.0, bump_steps=16):
        # v: [ndims, num_thetas]; stored just like the torch layer end-to-end
        # (movedim in __init__ then movedim back in forward == identity).
        self.v = v
        self.lin = jnp.linspace(-radius, radius, bump_steps, dtype=jnp.float32)

    def __call__(self, x, batch_idx, node_weights, num_graphs):
        return wect_points_pallas(x, batch_idx, node_weights, self.v, self.lin,
                                  num_graphs)


def wect_points_ref(x, batch_idx, node_weights, v, lin, num_graphs):
    """Plain-JAX reference mirroring compute_wecc for ect_type='points'."""
    nh = x @ v                                                           # [N, T]
    ecc = jax.nn.sigmoid(SCALE * (lin[:, None, None] - nh[None, :, :]))  # [S, N, T]
    ecc = ecc * node_weights[None, :, None]
    ecc = jnp.moveaxis(ecc, 0, 1)                                        # [N, S, T]
    return jax.ops.segment_sum(ecc, batch_idx, num_segments=num_graphs)  # [B, S, T]


if __name__ == "__main__":
    key = jax.random.PRNGKey(0)
    B, D, T, S = 2, 3, 16, 16          # graphs, ndims, num_thetas, bump_steps
    N = 32                             # total nodes across the batch

    kx, kw, kv = jax.random.split(key, 3)
    x = jax.random.normal(kx, (N, D), dtype=jnp.float32)
    x = x / jnp.max(jnp.linalg.norm(x, axis=1))          # nodes inside unit ball
    node_weights = jax.random.uniform(kw, (N,), dtype=jnp.float32)
    batch_idx = jnp.repeat(jnp.arange(B, dtype=jnp.int32), N // B)

    # Deterministic directions on the unit sphere (config.radius = 1, fixed=True).
    v = jax.random.normal(kv, (D, T), dtype=jnp.float32)
    v = v / jnp.linalg.norm(v, axis=0, keepdims=True)

    layer = WECTLayer(v, radius=1.0, bump_steps=S)
    out = layer(x, batch_idx, node_weights, B)
    jax.block_until_ready(out)

    ref = wect_points_ref(x, batch_idx, node_weights, v, layer.lin, B)
    assert out.shape == (B, S, T), out.shape
    # bf16 matmul operands (f32 accumulation) -> ~0.4% relative error budget.
    assert jnp.allclose(out, ref, atol=1e-2, rtol=1e-2), \
        float(jnp.max(jnp.abs(out - ref)))

    print("KERNEL_OK")
</pallas_src>

<mosaic_0001>
module attributes {stable_mosaic.version = 11 : i64} {
  func.func @_wect_points_kernel(%arg0: i32, %arg1: memref<1x128xf32, #tpu.memory_space<vmem>>, %arg2: memref<32x128xf32, #tpu.memory_space<vmem>>, %arg3: memref<2x32xbf16, #tpu.memory_space<vmem>>, %arg4: memref<2x128xf32, #tpu.memory_space<vmem>>) attributes {dimension_semantics = [#tpu.dimension_semantics<parallel>], iteration_bounds = array<i64: 2>, scalar_prefetch = 0 : i64, scratch_operands = 0 : i64, tpu.core_type = #tpu.core_type<tc>, window_params = [{transform_indices = @transform_0, window_bounds = array<i64: 1, 128>}, {pipeline_mode = #tpu.pipeline_mode<synchronous>, transform_indices = @transform_1, window_bounds = array<i64: 32, 128>}, {pipeline_mode = #tpu.pipeline_mode<synchronous>, transform_indices = @transform_2, window_bounds = array<i64: 2, 32>}, {transform_indices = @transform_3, window_bounds = array<i64: 2, 128>}]} {
    %c0 = arith.constant 0 : index
    %c0_0 = arith.constant 0 : index
    %0 = vector.load %arg1[%c0, %c0_0] : memref<1x128xf32, #tpu.memory_space<vmem>>, vector<1x128xf32>
    %c0_1 = arith.constant 0 : index
    %c0_2 = arith.constant 0 : index
    %1 = vector.load %arg2[%c0_1, %c0_2] : memref<32x128xf32, #tpu.memory_space<vmem>>, vector<32x128xf32>
    %2 = vector.broadcast %0 : vector<1x128xf32> to vector<32x128xf32>
    %3 = arith.subf %2, %1 : vector<32x128xf32>
    %4 = arith.negf %3 : vector<32x128xf32>
    %5 = math.exp %4 : vector<32x128xf32>
    %cst = arith.constant 1.000000e+00 : f32
    %6 = vector.broadcast %cst : f32 to vector<32x128xf32>
    %7 = arith.addf %6, %5 : vector<32x128xf32>
    %8 = arith.divf %6, %7 : vector<32x128xf32>
    %c0_3 = arith.constant 0 : index
    %c0_4 = arith.constant 0 : index
    %9 = vector.load %arg3[%c0_3, %c0_4] : memref<2x32xbf16, #tpu.memory_space<vmem>>, vector<2x32xbf16>
    %10 = arith.truncf %8 : vector<32x128xf32> to vector<32x128xbf16>
    %cst_5 = arith.constant dense<0.000000e+00> : vector<2x128xf32>
    %11 = tpu.matmul %9, %10, %cst_5 {dimension_numbers = #tpu.dot_dimension_numbers<[1], [0], [0], [1], [0, 0, 1, 1], [], []>} : vector<2x32xbf16>, vector<32x128xbf16>, vector<2x128xf32> -> vector<2x128xf32>
    %c0_6 = arith.constant 0 : index
    %c0_7 = arith.constant 0 : index
    %12 = vector.load %arg4[%c0_6, %c0_7] : memref<2x128xf32, #tpu.memory_space<vmem>>, vector<2x128xf32>
    tpu.vector_store %arg4[%c0_6, %c0_7], %11 {strides = array<i32>} : memref<2x128xf32, #tpu.memory_space<vmem>>, vector<2x128xf32>,
    return
  }
  func.func @transform_0(%arg0: i32) -> (i32, i32) {
    %c0_i32 = arith.constant 0 : i32
    %c0_i32_0 = arith.constant 0 : i32
    return %c0_i32, %arg0 : i32, i32
  }
  func.func @transform_1(%arg0: i32) -> (i32, i32) {
    %c0_i32 = arith.constant 0 : i32
    %c0_i32_0 = arith.constant 0 : i32
    %c0_i32_1 = arith.constant 0 : i32
    return %c0_i32, %c0_i32_0 : i32, i32
  }
  func.func @transform_2(%arg0: i32) -> (i32, i32) {
    %c0_i32 = arith.constant 0 : i32
    %c0_i32_0 = arith.constant 0 : i32
    %c0_i32_1 = arith.constant 0 : i32
    return %c0_i32, %c0_i32_0 : i32, i32
  }
  func.func @transform_3(%arg0: i32) -> (i32, i32) {
    %c0_i32 = arith.constant 0 : i32
    %c0_i32_0 = arith.constant 0 : i32
    return %c0_i32, %arg0 : i32, i32
  }
}

</mosaic_0001>

<llo_original>
// kernel: tpu_custom_call.1
$region0: #{tpu_custom_call.1}
  #allocation0 [shape = 'u32[]', space=smem, size = 0x4, offset = 0x4, fixed_abs, tag = 'smem constant byte address 0x4 - core index']
  #allocation1 [shape = 'u32[72,128]{1,0:T(1,128)}', space=vmem, size = 0x9000, scoped, tag = 'internal scratch']
  %s0 = inlined_call_operand.hbm [shape: f32[1,256], index: 0, kind: input, shape index: {}]
  %s1 = inlined_call_operand.hbm [shape: f32[32,128], index: 1, kind: input, shape index: {}]
  %s2 = inlined_call_operand.vmem [shape: bf16[2,32], index: 2, kind: input, shape index: {}]
  %s3 = inlined_call_operand.hbm [shape: f32[2,256], index: 3, kind: output, shape index: {}]
  %s4 = sld [smem:[#allocation0]]
  $region53: #{tpu_custom_call.1} parent=0
    _
  %s6 = ssub.s32 1, %s4
  %s7 = scalar_select 0, %s6, %s4
  $region1: #{tpu_custom_call.1} parent=0
    #allocation2 [shape = 'u8[1024]{0}', space=vmem, size = 0x400, scoped, tag = 'input window, operand 0']
    #allocation3 [shape = 's32[2]{0}', space=sflag, size = 0x8, scoped, tag = 'scoped memory for tpu_custom_call.1']
    #allocation4 [shape = 's32[2]{0}', space=sflag, size = 0x8, scoped, tag = 'scoped memory for tpu_custom_call.1']
    #allocation5 [shape = 'u8[16384]{0}', space=vmem, size = 0x4000, scoped, tag = 'input window, operand 1, single buffered']
    #allocation6 [shape = 's32[1]{0}', space=sflag, size = 0x4, scoped, tag = 'scoped memory for tpu_custom_call.1']
    #allocation7 [shape = 'u8[2048]{0}', space=vmem, size = 0x800, scoped, tag = 'output window, operand 0']
    %8 = vsyncpa [#allocation3], 0
    %s9 = scalar_lea.sflag [#allocation3], 1
    %10 = vsyncpa %s9, 0
    %11 = vsyncpa [#allocation6], 0
    %12 = vsyncpa [#allocation4], 0
    %s13 = scalar_lea.sflag [#allocation4], 1
    %14 = vsyncpa %s13, 0
    loop: start=0, step=1, limit=4
    $region2: #{tpu_custom_call.1} parent=1 // loop_pre_header
      _
    $region3: #{tpu_custom_call.1} parent=1 // loop_header
      %s16 = sphi 0, %s20
      %p17 = scmp.ge.s32.totalorder %s16, 4
      %s26 = sphi 0, %s28
      %s29 = sphi 0, %s26
      %s30 = sphi 0, %s29
      %s46 = sphi 0, %s30
      %s50 = sphi 0, %s50
      %s52 = sphi 0, %s50
      %s53 = sphi 0, %s52
      %s67 = sphi 0, %s53
      %s71 = sphi 0, %s71
      %s73 = sphi 0, %s71
      %s74 = sphi 0, %s73
      %s88 = sphi 0, %s74
      %s94 = sphi 0, %s96
      %s97 = sphi 0, %s94
      %s98 = sphi 0, %s97
      %s114 = sphi 0, %s98
    $region4: #{tpu_custom_call.1} parent=1 // loop_header_branch
      %19 = sbr.rel (%p17) target = $region8
    $region5: #{tpu_custom_call.1} parent=1 // loop_body
      %s21 = ssub.s32 %s16, 1
      %s22 = ssub.s32 %s16, 2
      %s23 = sadd.s32 %s16, 1
      %s24 = ssub.s32 %s16, %s23
      %p25 = scmp.eq.s32.totalorder %s24, 0
      %s27 = sadd.s32 %s26, 1
      %s28 = scalar_select %p25, %s26, %s27
      %p31 = pneg %p25
      %p32 = scmp.eq.s32.totalorder %s16, 1
      %p33 = por %p31, %p32
      %p34 = scmp.ne.s32.totalorder %s26, %s29
      %p35 = scmp.eq.s32.totalorder %s16, 0
      %p36 = por %p34, %p35
      %p37 = scmp.ne.s32.totalorder %s26, %s29
      %p38 = scmp.eq.s32.totalorder %s21, 1
      %p39 = por %p37, %p38
      %p40 = scmp.ne.s32.totalorder %s29, %s30
      %p41 = scmp.eq.s32.totalorder %s21, 0
      %p42 = por %p40, %p41
      %p43 = scmp.ne.s32.totalorder %s29, %s30
      %p44 = scmp.eq.s32.totalorder %s22, 1
      %p45 = por %p43, %p44
      %p47 = scmp.ne.s32.totalorder %s30, %s46
      %p48 = scmp.eq.s32.totalorder %s22, 0
      %p49 = por %p47, %p48
      %s51 = sadd.s32 %s50, 1
      %p54 = scmp.eq.s32.totalorder %s16, 1
      %p55 = scmp.ne.s32.totalorder %s50, %s52
      %p56 = scmp.eq.s32.totalorder %s16, 0
      %p57 = por %p55, %p56
      %p58 = scmp.ne.s32.totalorder %s50, %s52
      %p59 = scmp.eq.s32.totalorder %s21, 1
      %p60 = por %p58, %p59
      %p61 = scmp.ne.s32.totalorder %s52, %s53
      %p62 = scmp.eq.s32.totalorder %s21, 0
      %p63 = por %p61, %p62
      %p64 = scmp.ne.s32.totalorder %s52, %s53
      %p65 = scmp.eq.s32.totalorder %s22, 1
      %p66 = por %p64, %p65
      %p68 = scmp.ne.s32.totalorder %s53, %s67
      %p69 = scmp.eq.s32.totalorder %s22, 0
      %p70 = por %p68, %p69
      %s72 = sadd.s32 %s71, 1
      %p75 = scmp.eq.s32.totalorder %s16, 1
      %p76 = scmp.ne.s32.totalorder %s71, %s73
      %p77 = scmp.eq.s32.totalorder %s16, 0
      %p78 = por %p76, %p77
      %p79 = scmp.ne.s32.totalorder %s71, %s73
      %p80 = scmp.eq.s32.totalorder %s21, 1
      %p81 = por %p79, %p80
      %p82 = scmp.ne.s32.totalorder %s73, %s74
      %p83 = scmp.eq.s32.totalorder %s21, 0
      %p84 = por %p82, %p83
      %p85 = scmp.ne.s32.totalorder %s73, %s74
      %p86 = scmp.eq.s32.totalorder %s22, 1
      %p87 = por %p85, %p86
      %p89 = scmp.ne.s32.totalorder %s74, %s88
      %p90 = scmp.eq.s32.totalorder %s22, 0
      %p91 = por %p89, %p90
      %s92 = ssub.s32 %s16, %s23
      %p93 = scmp.eq.s32.totalorder %s92, 0
      %s95 = sadd.s32 %s94, 1
      %s96 = scalar_select %p93, %s94, %s95
      %p99 = pneg %p93
      %p100 = scmp.eq.s32.totalorder %s16, 1
      %p101 = por %p99, %p100
      %p102 = scmp.ne.s32.totalorder %s94, %s97
      %p103 = scmp.eq.s32.totalorder %s16, 0
      %p104 = por %p102, %p103
      %p105 = scmp.ne.s32.totalorder %s94, %s97
      %p106 = scmp.eq.s32.totalorder %s21, 1
      %p107 = por %p105, %p106
      %p108 = scmp.ne.s32.totalorder %s97, %s98
      %p109 = scmp.eq.s32.totalorder %s21, 0
      %p110 = por %p108, %p109
      %p111 = scmp.ne.s32.totalorder %s97, %s98
      %p112 = scmp.eq.s32.totalorder %s22, 1
      %p113 = por %p111, %p112
      %p115 = scmp.ne.s32.totalorder %s98, %s114
      %p116 = scmp.eq.s32.totalorder %s22, 0
      %p117 = por %p115, %p116
      %p118 = scmp.le.s32.totalorder 1, %s16
      %p119 = scmp.lt.s32.totalorder %s16, 3
      %p120 = pnand %p118, %p119
      %p121 = pneg %p120
      // Predicated region
      $region9: #{tpu_custom_call.1} parent=5 // pred_check
        _
      $region10: #{tpu_custom_call.1} parent=5 // pred_check_branch
        %123 = sbr.rel (%p120) target = $region12
      $region11: #{tpu_custom_call.1} parent=5 // pred_region
        %s124 = ssub.s32 %s16, 1
        // Predicated region
        $region13: #{tpu_custom_call.1} parent=11 // pred_check
          %p125 = pneg %p63
        $region14: #{tpu_custom_call.1} parent=11 // pred_check_branch
          %127 = sbr.rel (%p125) target = $region16
        $region15: #{tpu_custom_call.1} parent=11 // pred_region
          %129 = vsyncadd [#allocation6], 0
          %s130 = sshll.u32 %s1, 4
          %s131 = int_to_ptr.hbm [resolvable:$true] %s130
          %s132 = sshll.u32 [#allocation5], 4
          %s133 = int_to_ptr.vmem [resolvable:$true] %s132
          %138 = dma.hbm_to_vmem [thread:$0]  %s131, 512, %s133, [#allocation6], 128, 128, 8
        $region16: #{tpu_custom_call.1} parent=11 // pred_fallthru
          _
        // Predicated region
        $region17: #{tpu_custom_call.1} parent=11 // pred_check
          %p139 = pneg %p84
        $region18: #{tpu_custom_call.1} parent=11 // pred_check_branch
          %141 = sbr.rel (%p139) target = $region20
        $region19: #{tpu_custom_call.1} parent=11 // pred_region
          _
        $region20: #{tpu_custom_call.1} parent=11 // pred_fallthru
          _
      $region12: #{tpu_custom_call.1} parent=5 // pred_fallthru
        _
      %p142 = scmp.lt.s32.totalorder %s16, 2
      // Predicated region
      $region21: #{tpu_custom_call.1} parent=5 // pred_check
        %p143 = pneg %p142
      $region22: #{tpu_custom_call.1} parent=5 // pred_check_branch
        %145 = sbr.rel (%p143) target = $region24
      $region23: #{tpu_custom_call.1} parent=5 // pred_region
        // Predicated region
        $region25: #{tpu_custom_call.1} parent=23 // pred_check
          %p146 = pneg %p36
        $region26: #{tpu_custom_call.1} parent=23 // pred_check_branch
          %148 = sbr.rel (%p146) target = $region28
        $region27: #{tpu_custom_call.1} parent=23 // pred_region
          %s149 = sand.u32 %s26, 1
          %s150 = scalar_lea.sflag [#allocation3], %s149
          %s151 = sand.u32 %s26, 1
          %s152 = scalar_lea.vmem [#allocation2], %s151
          %154 = vsyncadd %s150, 0
          %s155 = scalar_lea.hbm %s0, %s16
          %s157 = sshll.u32 %s155, 4
          %s158 = int_to_ptr.hbm [resolvable:$true] %s157
          %s159 = sshll.u32 %s152, 4
          %s160 = int_to_ptr.vmem [resolvable:$true] %s159
          %162 = dma.hbm_to_vmem [thread:$0]  %s158, 16, %s160, %s150
        $region28: #{tpu_custom_call.1} parent=23 // pred_fallthru
          _
      $region24: #{tpu_custom_call.1} parent=5 // pred_fallthru
        _
      %p163 = scmp.le.s32.totalorder 1, %s16
      %p164 = scmp.lt.s32.totalorder %s16, 3
      %p165 = pnand %p163, %p164
      %p166 = pneg %p165
      // Predicated region
      $region29: #{tpu_custom_call.1} parent=5 // pred_check
        _
      $region30: #{tpu_custom_call.1} parent=5 // pred_check_branch
        %168 = sbr.rel (%p165) target = $region32
      $region31: #{tpu_custom_call.1} parent=5 // pred_region
        %s169 = ssub.s32 %s16, 1
        %s170 = sand.u32 %s29, 1
        %s171 = scalar_lea.sflag [#allocation3], %s170
        %s172 = sand.u32 %s29, 1
        %s173 = scalar_lea.vmem [#allocation2], %s172
        // Predicated region
        $region33: #{tpu_custom_call.1} parent=31 // pred_check
          %p174 = pneg %p42
        $region34: #{tpu_custom_call.1} parent=31 // pred_check_branch
          %176 = sbr.rel (%p174) target = $region36
        $region35: #{tpu_custom_call.1} parent=31 // pred_region
          %178 = dma.done %s171, 16
        $region36: #{tpu_custom_call.1} parent=31 // pred_fallthru
          _
        // Predicated region
        $region37: #{tpu_custom_call.1} parent=31 // pred_check
          %p179 = pneg %p63
        $region38: #{tpu_custom_call.1} parent=31 // pred_check_branch
          %181 = sbr.rel (%p179) target = $region40
        $region39: #{tpu_custom_call.1} parent=31 // pred_region
          %183 = dma.done [#allocation6], 512
        $region40: #{tpu_custom_call.1} parent=31 // pred_fallthru
          _
        %s184 = sand.u32 %s29, 1
        %s185 = scalar_lea.sflag [#allocation3], %s184
        %s186 = sand.u32 %s29, 1
        %s187 = scalar_lea.vmem [#allocation2], %s186
        %p188 = pneg %p42
        %p189 = pneg %p39
        %p190 = pneg %p63
        %p191 = pneg %p60
        %p192 = pneg %p84
        %p193 = pneg %p81
        %p194 = pneg %p110
        %p195 = pneg %p107
        %s196 = sand.u32 %s97, 1
        %s197 = scalar_lea.sflag [#allocation4], %s196
        %s198 = sand.u32 %s97, 1
        %s199 = smul.addr %s198, 2
        %s200 = scalar_lea.vmem [#allocation7], %s199
        %v202 = vld [vmem:[%s173] sm:$0x1]
        %v203 = vld [vmem:[#allocation5] sm:$0xff]
        %v204 = vld [vmem:[#allocation5 + $0x8] sm:$0xff]
        %v205 = vld [vmem:[#allocation5 + $0x10] sm:$0xff]
        %v206 = vld [vmem:[#allocation5 + $0x18] sm:$0xff]
        %v208 = vperm.slane %v202, 0
        %v210 = vsub.f32 %v208, %v203
        %v211 = vsub.f32 %v208, %v204
        %v212 = vsub.f32 %v208, %v205
        %v213 = vsub.f32 %v208, %v206
        %v214 = vxor.u32 %v210, 2147483648
        %v215 = vxor.u32 %v211, 2147483648
        %v216 = vxor.u32 %v212, 2147483648
        %v217 = vxor.u32 %v213, 2147483648
        %v218 = vmul.f32 %v214, 1.442695
        %v219 = vpow.pop %v218
        %v220 = vmul.f32 %v215, 1.442695
        %v221 = vpow.pop %v220
        %v222 = vmul.f32 %v216, 1.442695
        %v223 = vpow.pop %v222
        %v224 = vmul.f32 %v217, 1.442695
        %v225 = vpow.pop %v224
        %v226 = vadd.f32 %v219, 1.0
        %v227 = vadd.f32 %v221, 1.0
        %v228 = vadd.f32 %v223, 1.0
        %v229 = vadd.f32 %v225, 1.0
        %v230 = vrcp.pop %v226
        %v231 = vmul.f32 %v226, %v230
        %v232 = vsub.f32 1.0, %v231
        %v233 = vmul.f32 %v230, %v232
        %v234 = vadd.f32 %v230, %v233
        %vm235 = vweird.f32 %v226
        %vm236 = vweird.f32 %v230
        %vm237 = vmor %vm235, %vm236
        %v238 = vsel %vm237, %v230, %v234
        %v239 = vand.u32 2147483647, %v226
        %vm240 = vcmp.eq.f32.partialorder %v239, 8.507059e+37
        %v241 = vand.u32 %v226, 2147483648
        %v242 = vor.u32 1.1754944e-38, %v241
        %v243 = vsel %vm240, %v242, %v238
        %v244 = vmul.f32 1.0, %v243
        %v245 = vrcp.pop %v227
        %v246 = vmul.f32 %v227, %v245
        %v247 = vsub.f32 1.0, %v246
        %v248 = vmul.f32 %v245, %v247
        %v249 = vadd.f32 %v245, %v248
        %vm250 = vweird.f32 %v227
        %vm251 = vweird.f32 %v245
        %vm252 = vmor %vm250, %vm251
        %v253 = vsel %vm252, %v245, %v249
        %v254 = vand.u32 2147483647, %v227
        %vm255 = vcmp.eq.f32.partialorder %v254, 8.507059e+37
        %v256 = vand.u32 %v227, 2147483648
        %v257 = vor.u32 1.1754944e-38, %v256
        %v258 = vsel %vm255, %v257, %v253
        %v259 = vmul.f32 1.0, %v258
        %v260 = vrcp.pop %v228
        %v261 = vmul.f32 %v228, %v260
        %v262 = vsub.f32 1.0, %v261
        %v263 = vmul.f32 %v260, %v262
        %v264 = vadd.f32 %v260, %v263
        %vm265 = vweird.f32 %v228
        %vm266 = vweird.f32 %v260
        %vm267 = vmor %vm265, %vm266
        %v268 = vsel %vm267, %v260, %v264
        %v269 = vand.u32 2147483647, %v228
        %vm270 = vcmp.eq.f32.partialorder %v269, 8.507059e+37
        %v271 = vand.u32 %v228, 2147483648
        %v272 = vor.u32 1.1754944e-38, %v271
        %v273 = vsel %vm270, %v272, %v268
        %v274 = vmul.f32 1.0, %v273
        %v275 = vrcp.pop %v229
        %v276 = vmul.f32 %v229, %v275
        %v277 = vsub.f32 1.0, %v276
        %v278 = vmul.f32 %v275, %v277
        %v279 = vadd.f32 %v275, %v278
        %vm280 = vweird.f32 %v229
        %vm281 = vweird.f32 %v275
        %vm282 = vmor %vm280, %vm281
        %v283 = vsel %vm282, %v275, %v279
        %v284 = vand.u32 2147483647, %v229
        %vm285 = vcmp.eq.f32.partialorder %v284, 8.507059e+37
        %v286 = vand.u32 %v229, 2147483648
        %v287 = vor.u32 1.1754944e-38, %v286
        %v288 = vsel %vm285, %v287, %v283
        %v289 = vmul.f32 1.0, %v288
        %v290 = vld [vmem:[%s2] sm:$0x1]
        %v291 = vpack.c.bf16 %v259, %v244
        %v292 = vpack.c.bf16 %v289, %v274
        %vm293 = vcmask 261120
        %v295 = vsel %vm293, %v290, 0
        %297 = vmatpush.bf16.msra.mxu0 0
        %298 = vmatpush.bf16.msra.mxu0 0
        %299 = vmatpush.bf16.msra.mxu0 0
        %300 = vmatpush.bf16.msra.mxu0 0
        %301 = vmatpush.bf16.msra.mxu0 0
        %302 = vmatpush.bf16.msra.mxu0 0
        %303 = vmatpush.bf16.msra.mxu0 %v292
        %304 = vmatpush.bf16.msra.mxu0 %v291
        %305 = vmatmul.bf16.gmra.mxu0 %v295
        %v306 = vpop.f32.mrf.mxu0
        %v307 = vadd.f32 0.0, %v306
        %v308 = vpop.f32.mrf.mxu0
        %309 = vdwg.mxu0
        %310 = vst [vmem:[%s200] sm:$0x3] %v307
        %s311 = sand.u32 %s97, 1
        %s312 = scalar_lea.sflag [#allocation4], %s311
        %s313 = sand.u32 %s97, 1
        %s314 = smul.addr %s313, 2
        %s315 = scalar_lea.vmem [#allocation7], %s314
        // Predicated region
        $region41: #{tpu_custom_call.1} parent=31 // pred_check
          %p316 = pneg %p107
        $region42: #{tpu_custom_call.1} parent=31 // pred_check_branch
          %318 = sbr.rel (%p316) target = $region44
        $region43: #{tpu_custom_call.1} parent=31 // pred_region
          %320 = vsyncadd %s312, 0
          %s321 = smul.addr %s21, 2
          %s322 = scalar_lea.hbm %s3, %s321
          %s324 = sshll.u32 %s315, 4
          %s325 = int_to_ptr.vmem [resolvable:$true] %s324
          %s326 = sshll.u32 %s322, 4
          %s327 = int_to_ptr.hbm [resolvable:$true] %s326
          %329 = dma.vmem_to_hbm [thread:$0]  %s325, 32, %s327, %s312
        $region44: #{tpu_custom_call.1} parent=31 // pred_fallthru
          _
      $region32: #{tpu_custom_call.1} parent=5 // pred_fallthru
        _
      %p330 = scmp.le.s32.totalorder 2, %s16
      // Predicated region
      $region45: #{tpu_custom_call.1} parent=5 // pred_check
        %p331 = pneg %p330
      $region46: #{tpu_custom_call.1} parent=5 // pred_check_branch
        %333 = sbr.rel (%p331) target = $region48
      $region47: #{tpu_custom_call.1} parent=5 // pred_region
        %s334 = ssub.s32 %s16, 2
        // Predicated region
        $region49: #{tpu_custom_call.1} parent=47 // pred_check
          %p335 = pneg %p113
        $region50: #{tpu_custom_call.1} parent=47 // pred_check_branch
          %337 = sbr.rel (%p335) target = $region52
        $region51: #{tpu_custom_call.1} parent=47 // pred_region
          %s338 = sand.u32 %s98, 1
          %s339 = scalar_lea.sflag [#allocation4], %s338
          %s340 = sand.u32 %s98, 1
          %s341 = smul.addr %s340, 2
          %s342 = scalar_lea.vmem [#allocation7], %s341
          %344 = dma.done %s339, 32
        $region52: #{tpu_custom_call.1} parent=47 // pred_fallthru
          _
      $region48: #{tpu_custom_call.1} parent=5 // pred_fallthru
        _
    $region6: #{tpu_custom_call.1} parent=1 // loop_footer
      %s20 = sadd.s32 1, %s16
    $region7: #{tpu_custom_call.1} parent=1 // loop_footer_branch
      %15 = sbr.rel target = $region3
    $region8: #{tpu_custom_call.1} parent=1 // loop_exit
      _
    %345 = vsyncpa [#allocation3], 1
    %s346 = scalar_lea.sflag [#allocation3], 1
    %347 = vsyncpa %s346, 1
    %348 = vsyncpa [#allocation6], 1
    %349 = vsyncpa [#allocation4], 1
    %s350 = scalar_lea.sflag [#allocation4], 1
    %351 = vsyncpa %s350, 1

</llo_original>
